<compile_context>
chip_gen: v7x
topology: tpu7x:2x2x1
jax: 0.10.0
libtpu: 0.0.40
codegen_flags: <defaults>
</compile_context>

<pallas_src>
import functools

import jax
import jax.numpy as jnp
from jax.experimental import pallas as pl
from jax.experimental.pallas import tpu as pltpu

EPS = 1e-8  # asteroid gLN epsilon


def _round_up(a, b):
    return (a + b - 1) // b * b


def _pick_t_tile(t_out_pad):
    """Largest 128-multiple <= 512 that divides t_out_pad (a 128-multiple)."""
    m = t_out_pad // 128
    for d in (4, 3, 2, 1):
        if m % d == 0:
            return d * 128
    return 128


def _conv_prelu(x_ref, w_ref, b_ref, alpha_ref):
    """Fused (H8, KC) x (KC, T_TILE) bf16 MXU contraction + bias + PReLU (f32)."""
    acc = jnp.dot(w_ref[...], x_ref[0], preferred_element_type=jnp.float32)
    acc = acc + b_ref[...]
    a = alpha_ref[0]
    return jnp.where(acc > 0, acc, a * acc)


def _stats_kernel(x_ref, w_ref, b_ref, alpha_ref, stats_ref, *, tail_rem, t_tile):
    """Pass 1 (stats only).  Grid = (batch, time_tile).

    x_ref:     (1, KC, T_TILE)    bf16 im2col tile (halo-free, lane-aligned)
    w_ref:     (H8, KC)           bf16 fused tap-major conv weight
    b_ref:     (H8, 1)            f32 conv bias
    alpha_ref: (1,)               f32 PReLU slope (SMEM)
    stats_ref: (1, 1, 16, T_TILE) f32: rows 0:8 = partial sum, 8:16 = partial sumsq
    """
    y = _conv_prelu(x_ref, w_ref, b_ref, alpha_ref)          # (H8, T_TILE) f32
    h8 = y.shape[0]

    def write_stats(ym):
        yr = ym.reshape(h8 // 8, 8, t_tile)                  # layout-free split
        stats_ref[0, 0, 0:8, :] = jnp.sum(yr, axis=0)        # pure VPU adds
        stats_ref[0, 0, 8:16, :] = jnp.sum(yr * yr, axis=0)

    if tail_rem == t_tile:
        # No padded time columns anywhere: no masking at all.
        write_stats(y)
    else:
        last = pl.num_programs(1) - 1

        @pl.when(pl.program_id(1) != last)
        def _():
            write_stats(y)

        @pl.when(pl.program_id(1) == last)
        def _():
            col = jax.lax.broadcasted_iota(jnp.int32, y.shape, 1)
            write_stats(jnp.where(col < tail_rem, y, 0.0))


def _conv_norm_kernel(x_ref, w_ref, b_ref, alpha_ref, s_ref, t_ref, o_ref):
    """Pass 2: recompute conv+bias+PReLU and fuse the folded gLN FMA."""
    y = _conv_prelu(x_ref, w_ref, b_ref, alpha_ref)          # (H8, T_TILE) f32
    o_ref[0] = y * s_ref[0] + t_ref[0]


def conv1d_block(x, weight, bias, alpha, gamma, beta, *, padding, dilation):
    """x: (B, C_in, T) f32.  weight: (H, C_in, K).  Returns (B, H, T_out) f32."""
    B, C_in, T = x.shape
    H, _, K = weight.shape
    t_out = T + 2 * padding - dilation * (K - 1)

    t_out_pad = _round_up(t_out, 128)
    t_tile = _pick_t_tile(t_out_pad)
    n_tiles = t_out_pad // t_tile
    tail_rem = t_out - (n_tiles - 1) * t_tile
    halo = dilation * (K - 1)

    kc = K * C_in
    kc_pad = _round_up(kc, 8)
    h8 = _round_up(H, 8)

    # Tap-major im2col built once in HBM: X[b, k*C_in + c, t] = x_pad[b, c, t + k*dil].
    # TODO(synk): for very large C_in the extra K x HBM copy of x gets costly;
    # in that regime switch to in-kernel halo windows via manual make_async_copy.
    x_bf = x.astype(jnp.bfloat16)
    x_tpad = jnp.pad(x_bf, ((0, 0), (0, 0),
                            (padding, t_out_pad + halo - padding - T)))
    x_im = jnp.stack([x_tpad[:, :, k * dilation:k * dilation + t_out_pad]
                      for k in range(K)], axis=1).reshape(B, kc, t_out_pad)
    if kc_pad != kc:
        x_im = jnp.pad(x_im, ((0, 0), (0, kc_pad - kc), (0, 0)))

    # (H, C_in, K) -> (H, K, C_in) -> (H, K*C_in), zero-padded to (h8, kc_pad).
    w2 = jnp.transpose(weight, (0, 2, 1)).reshape(H, kc)
    w2 = jnp.pad(w2, ((0, h8 - H), (0, kc_pad - kc))).astype(jnp.bfloat16)
    bias2 = jnp.pad(bias.astype(jnp.float32), (0, h8 - H)).reshape(h8, 1)
    alpha1 = jnp.reshape(alpha, (1,)).astype(jnp.float32)

    def _common_in_specs():
        return [
            pl.BlockSpec((1, kc_pad, t_tile), lambda b, j: (b, 0, j)),
            pl.BlockSpec((h8, kc_pad), lambda b, j: (0, 0)),
            pl.BlockSpec((h8, 1), lambda b, j: (0, 0)),
            pl.BlockSpec(memory_space=pltpu.MemorySpace.SMEM),
        ]

    params = pltpu.CompilerParams(dimension_semantics=("parallel", "parallel"))

    # Pass 1: per-(batch, tile) partial gLN statistics; no activations hit HBM.
    stats = pl.pallas_call(
        functools.partial(_stats_kernel, tail_rem=tail_rem, t_tile=t_tile),
        out_shape=jax.ShapeDtypeStruct((B, n_tiles, 16, t_tile), jnp.float32),
        grid_spec=pltpu.PrefetchScalarGridSpec(
            num_scalar_prefetch=0,
            grid=(B, n_tiles),
            in_specs=_common_in_specs(),
            out_specs=pl.BlockSpec((1, 1, 16, t_tile), lambda b, j: (b, j, 0, 0)),
        ),
        compiler_params=params,
    )(x_im, w2, bias2, alpha1)

    # Fold gLN into per-(batch, channel) scale/shift (tiny (B, H8) math in JAX).
    count = H * t_out
    tot = jnp.sum(stats[:, :, 0:8, :], axis=(1, 2, 3))           # (B,)
    tot_sq = jnp.sum(stats[:, :, 8:16, :], axis=(1, 2, 3))       # (B,)
    mean = tot / count
    var = jnp.maximum(tot_sq / count - mean * mean, 0.0)         # guard cancellation
    inv = jax.lax.rsqrt(var + EPS)
    gamma_p = jnp.pad(gamma.astype(jnp.float32), (0, h8 - H))
    beta_p = jnp.pad(beta.astype(jnp.float32), (0, h8 - H))
    s = gamma_p[None, :] * inv[:, None]                           # (B, H8)
    t = beta_p[None, :] - mean[:, None] * s                       # (B, H8)
    s3 = s[:, :, None]
    t3 = t[:, :, None]

    # Pass 2: recompute conv+PReLU on the MXU and fuse the gLN FMA -> output.
    out = pl.pallas_call(
        _conv_norm_kernel,
        out_shape=jax.ShapeDtypeStruct((B, h8, t_out_pad), jnp.float32),
        grid_spec=pltpu.PrefetchScalarGridSpec(
            num_scalar_prefetch=0,
            grid=(B, n_tiles),
            in_specs=_common_in_specs() + [
                pl.BlockSpec((1, h8, 1), lambda b, j: (b, 0, 0)),
                pl.BlockSpec((1, h8, 1), lambda b, j: (b, 0, 0)),
            ],
            out_specs=pl.BlockSpec((1, h8, t_tile), lambda b, j: (b, 0, j)),
        ),
        compiler_params=params,
    )(x_im, w2, bias2, alpha1, s3, t3)

    return out[:, :H, :t_out]


def reference(x, weight, bias, alpha, gamma, beta, *, padding, dilation):
    """Pure-JAX reference with the same compute dtypes as the kernel
    (bf16 conv operands, f32 accumulation / PReLU / gLN)."""
    y = jax.lax.conv_general_dilated(
        x.astype(jnp.bfloat16), weight.astype(jnp.bfloat16),
        window_strides=(1,), padding=((padding, padding),),
        rhs_dilation=(dilation,), dimension_numbers=("NCH", "OIH", "NCH"),
        preferred_element_type=jnp.float32)
    y = y + bias[None, :, None]
    y = jnp.where(y > 0, y, alpha * y)                            # PReLU
    mean = y.mean(axis=(1, 2), keepdims=True)
    var = ((y - mean) ** 2).mean(axis=(1, 2), keepdims=True)
    y = (y - mean) / jnp.sqrt(var + EPS)
    return gamma[None, :, None] * y + beta[None, :, None]


if __name__ == "__main__":
    # Small shapes consistent with Conv1DBlock(in_chan, hid_chan, k, pad, dil).
    B, C_IN, HID, T = 2, 8, 16, 16
    K, DIL = 3, 2
    PAD = DIL * (K - 1) // 2  # "same" padding -> T_out == T

    key = jax.random.PRNGKey(0)
    kx, kw, kb = jax.random.split(key, 3)

    x = jax.random.normal(kx, (B, C_IN, T), dtype=jnp.float32)

    # Deterministic parameter init (kaiming_uniform-like for weight).
    fan_in = C_IN * K
    w_bound = jnp.sqrt(6.0 / fan_in)
    weight = jax.random.uniform(kw, (HID, C_IN, K), jnp.float32,
                                minval=-w_bound, maxval=w_bound)
    b_bound = 1.0 / jnp.sqrt(fan_in)
    bias = jax.random.uniform(kb, (HID,), jnp.float32,
                              minval=-b_bound, maxval=b_bound)
    alpha = jnp.float32(0.25)              # PReLU default init
    gamma = jnp.ones((HID,), jnp.float32)  # gLN gain init
    beta = jnp.zeros((HID,), jnp.float32)  # gLN bias init

    out = conv1d_block(x, weight, bias, alpha, gamma, beta,
                       padding=PAD, dilation=DIL)
    out = jax.block_until_ready(out)

    ref = reference(x, weight, bias, alpha, gamma, beta,
                    padding=PAD, dilation=DIL)
    assert out.shape == (B, HID, T), out.shape
    assert jnp.allclose(out, ref, atol=1e-3, rtol=1e-3), (
        float(jnp.max(jnp.abs(out - ref))))

    print("KERNEL_OK")
</pallas_src>

<mosaic_0001>
module attributes {stable_mosaic.version = 11 : i64} {
  func.func @_stats_kernel(%arg0: i32, %arg1: i32, %arg2: memref<1x24x128xbf16, #tpu.memory_space<vmem>>, %arg3: memref<16x24xbf16, #tpu.memory_space<vmem>>, %arg4: memref<16x1xf32, #tpu.memory_space<vmem>>, %arg5: memref<1xf32, #tpu.memory_space<smem>>, %arg6: memref<1x1x16x128xf32, #tpu.memory_space<vmem>>) attributes {dimension_semantics = [#tpu.dimension_semantics<parallel>, #tpu.dimension_semantics<parallel>], iteration_bounds = array<i64: 2, 1>, scalar_prefetch = 0 : i64, scratch_operands = 0 : i64, tpu.core_type = #tpu.core_type<tc>, window_params = [{transform_indices = @transform_0, window_bounds = array<i64: 1, 24, 128>}, {pipeline_mode = #tpu.pipeline_mode<synchronous>, transform_indices = @transform_1, window_bounds = array<i64: 16, 24>}, {pipeline_mode = #tpu.pipeline_mode<synchronous>, transform_indices = @transform_2, window_bounds = array<i64: 16, 1>}, {transform_indices = @transform_3, window_bounds = array<i64: 1>}, {transform_indices = @transform_4, window_bounds = array<i64: 1, 1, 16, 128>}]} {
    %c0 = arith.constant 0 : index
    %c0_0 = arith.constant 0 : index
    %0 = vector.load %arg3[%c0, %c0_0] : memref<16x24xbf16, #tpu.memory_space<vmem>>, vector<16x24xbf16>
    %c0_1 = arith.constant 0 : index
    %c0_2 = arith.constant 0 : index
    %c0_3 = arith.constant 0 : index
    %1 = vector.load %arg2[%c0_1, %c0_2, %c0_3] : memref<1x24x128xbf16, #tpu.memory_space<vmem>>, vector<1x24x128xbf16>
    %2 = vector.shape_cast %1 : vector<1x24x128xbf16> to vector<24x128xbf16>
    %cst = arith.constant dense<0.000000e+00> : vector<16x128xf32>
    %3 = tpu.matmul %0, %2, %cst {dimension_numbers = #tpu.dot_dimension_numbers<[1], [0], [0], [1], [0, 0, 1, 1], [], []>} : vector<16x24xbf16>, vector<24x128xbf16>, vector<16x128xf32> -> vector<16x128xf32>
    %c0_4 = arith.constant 0 : index
    %c0_5 = arith.constant 0 : index
    %4 = vector.load %arg4[%c0_4, %c0_5] : memref<16x1xf32, #tpu.memory_space<vmem>>, vector<16x1xf32>
    %5 = vector.broadcast %4 : vector<16x1xf32> to vector<16x128xf32>
    %6 = arith.addf %3, %5 : vector<16x128xf32>
    %c0_6 = arith.constant 0 : index
    %7 = memref.load %arg5[%c0_6] : memref<1xf32, #tpu.memory_space<smem>>
    %cst_7 = arith.constant 0.000000e+00 : f32
    %8 = vector.broadcast %cst_7 : f32 to vector<16x128xf32>
    %9 = arith.cmpf ogt, %6, %8 : vector<16x128xf32>
    %10 = vector.broadcast %7 : f32 to vector<16x128xf32>
    %11 = arith.mulf %10, %6 : vector<16x128xf32>
    %12 = arith.select %9, %6, %11 : vector<16x128xi1>, vector<16x128xf32>
    %c0_i32 = arith.constant 0 : i32
    %13 = arith.cmpi ne, %arg1, %c0_i32 : i32
    %14 = arith.extui %13 : i1 to i32
    %c0_i32_8 = arith.constant 0 : i32
    %15 = arith.cmpi ne, %14, %c0_i32_8 : i32
    scf.if %15 {
      %19 = vector.shape_cast %12 : vector<16x128xf32> to vector<2x8x128xf32>
      %cst_11 = arith.constant dense<0.000000e+00> : vector<8x128xf32>
      %20 = vector.multi_reduction <add>, %19, %cst_11 [0] : vector<2x8x128xf32> to vector<8x128xf32>
      %c0_12 = arith.constant 0 : index
      %c0_13 = arith.constant 0 : index
      %c0_14 = arith.constant 0 : index
      %c0_15 = arith.constant 0 : index
      %21 = vector.load %arg6[%c0_12, %c0_13, %c0_14, %c0_15] : memref<1x1x16x128xf32, #tpu.memory_space<vmem>>, vector<1x1x8x128xf32>
      %22 = vector.shape_cast %21 : vector<1x1x8x128xf32> to vector<8x128xf32>
      %23 = vector.shape_cast %20 : vector<8x128xf32> to vector<1x1x8x128xf32>
      tpu.vector_store %arg6[%c0_12, %c0_13, %c0_14, %c0_15], %23 {strides = array<i32>} : memref<1x1x16x128xf32, #tpu.memory_space<vmem>>, vector<1x1x8x128xf32>,
      %24 = arith.mulf %19, %19 : vector<2x8x128xf32>
      %cst_16 = arith.constant dense<0.000000e+00> : vector<8x128xf32>
      %25 = vector.multi_reduction <add>, %24, %cst_16 [0] : vector<2x8x128xf32> to vector<8x128xf32>
      %c0_17 = arith.constant 0 : index
      %c0_18 = arith.constant 0 : index
      %c8 = arith.constant 8 : index
      %c0_19 = arith.constant 0 : index
      %26 = vector.load %arg6[%c0_17, %c0_18, %c8, %c0_19] : memref<1x1x16x128xf32, #tpu.memory_space<vmem>>, vector<1x1x8x128xf32>
      %27 = vector.shape_cast %26 : vector<1x1x8x128xf32> to vector<8x128xf32>
      %28 = vector.shape_cast %25 : vector<8x128xf32> to vector<1x1x8x128xf32>
      tpu.vector_store %arg6[%c0_17, %c0_18, %c8, %c0_19], %28 {strides = array<i32>} : memref<1x1x16x128xf32, #tpu.memory_space<vmem>>, vector<1x1x8x128xf32>,
    } else {
    }
    %c0_i32_9 = arith.constant 0 : i32
    %16 = arith.cmpi eq, %arg1, %c0_i32_9 : i32
    %17 = arith.extui %16 : i1 to i32
    %c0_i32_10 = arith.constant 0 : i32
    %18 = arith.cmpi ne, %17, %c0_i32_10 : i32
    scf.if %18 {
      %19 = tpu.iota {dimensions = array<i32: 1>} : vector<16x128xi32>
      %c16_i32 = arith.constant 16 : i32
      %20 = vector.broadcast %c16_i32 : i32 to vector<16x128xi32>
      %21 = arith.cmpi slt, %19, %20 : vector<16x128xi32>
      %cst_11 = arith.constant 0.000000e+00 : f32
      %22 = vector.broadcast %cst_11 : f32 to vector<16x128xf32>
      %23 = arith.select %21, %12, %22 : vector<16x128xi1>, vector<16x128xf32>
      %24 = vector.shape_cast %23 : vector<16x128xf32> to vector<2x8x128xf32>
      %cst_12 = arith.constant dense<0.000000e+00> : vector<8x128xf32>
      %25 = vector.multi_reduction <add>, %24, %cst_12 [0] : vector<2x8x128xf32> to vector<8x128xf32>
      %c0_13 = arith.constant 0 : index
      %c0_14 = arith.constant 0 : index
      %c0_15 = arith.constant 0 : index
      %c0_16 = arith.constant 0 : index
      %26 = vector.load %arg6[%c0_13, %c0_14, %c0_15, %c0_16] : memref<1x1x16x128xf32, #tpu.memory_space<vmem>>, vector<1x1x8x128xf32>
      %27 = vector.shape_cast %26 : vector<1x1x8x128xf32> to vector<8x128xf32>
      %28 = vector.shape_cast %25 : vector<8x128xf32> to vector<1x1x8x128xf32>
      tpu.vector_store %arg6[%c0_13, %c0_14, %c0_15, %c0_16], %28 {strides = array<i32>} : memref<1x1x16x128xf32, #tpu.memory_space<vmem>>, vector<1x1x8x128xf32>,
      %29 = arith.mulf %24, %24 : vector<2x8x128xf32>
      %cst_17 = arith.constant dense<0.000000e+00> : vector<8x128xf32>
      %30 = vector.multi_reduction <add>, %29, %cst_17 [0] : vector<2x8x128xf32> to vector<8x128xf32>
      %c0_18 = arith.constant 0 : index
      %c0_19 = arith.constant 0 : index
      %c8 = arith.constant 8 : index
      %c0_20 = arith.constant 0 : index
      %31 = vector.load %arg6[%c0_18, %c0_19, %c8, %c0_20] : memref<1x1x16x128xf32, #tpu.memory_space<vmem>>, vector<1x1x8x128xf32>
      %32 = vector.shape_cast %31 : vector<1x1x8x128xf32> to vector<8x128xf32>
      %33 = vector.shape_cast %30 : vector<8x128xf32> to vector<1x1x8x128xf32>
      tpu.vector_store %arg6[%c0_18, %c0_19, %c8, %c0_20], %33 {strides = array<i32>} : memref<1x1x16x128xf32, #tpu.memory_space<vmem>>, vector<1x1x8x128xf32>,
    } else {
    }
    return
  }
  func.func @transform_0(%arg0: i32, %arg1: i32) -> (i32, i32, i32) {
    %c0_i32 = arith.constant 0 : i32
    %c0_i32_0 = arith.constant 0 : i32
    return %arg0, %c0_i32, %arg1 : i32, i32, i32
  }
  func.func @transform_1(%arg0: i32, %arg1: i32) -> (i32, i32) {
    %c0_i32 = arith.constant 0 : i32
    %c0_i32_0 = arith.constant 0 : i32
    %c0_i32_1 = arith.constant 0 : i32
    return %c0_i32, %c0_i32_0 : i32, i32
  }
  func.func @transform_2(%arg0: i32, %arg1: i32) -> (i32, i32) {
    %c0_i32 = arith.constant 0 : i32
    %c0_i32_0 = arith.constant 0 : i32
    %c0_i32_1 = arith.constant 0 : i32
    return %c0_i32, %c0_i32_0 : i32, i32
  }
  func.func @transform_3(%arg0: i32, %arg1: i32) -> i32 {
    %c0_i32 = arith.constant 0 : i32
    %c0_i32_0 = arith.constant 0 : i32
    return %c0_i32 : i32
  }
  func.func @transform_4(%arg0: i32, %arg1: i32) -> (i32, i32, i32, i32) {
    %c0_i32 = arith.constant 0 : i32
    %c0_i32_0 = arith.constant 0 : i32
    %c0_i32_1 = arith.constant 0 : i32
    return %arg0, %arg1, %c0_i32, %c0_i32_0 : i32, i32, i32, i32
  }
}

</mosaic_0001>

<llo_original>
// kernel: tpu_custom_call.1
$region0: #{tpu_custom_call.1}
  #allocation0 [shape = 'u32[]', space=smem, size = 0x4, offset = 0x4, fixed_abs, tag = 'smem constant byte address 0x4 - core index']
  #allocation1 [shape = 'u32[144,128]{1,0:T(1,128)}', space=vmem, size = 0x12000, scoped, tag = 'internal scratch']
  #allocation2 [shape = 'f32[1]{0:T(128)S(6)}', space=smem, size = 0x200, scoped, tag = 'scoped memory for tpu_custom_call.1']
  %s0 = inlined_call_operand.hbm [shape: bf16[2,24,128], index: 0, kind: input, shape index: {}]
  %s1 = inlined_call_operand.vmem [shape: bf16[16,24], index: 1, kind: input, shape index: {}]
  %s2 = inlined_call_operand.vmem [shape: f32[16,1], index: 2, kind: input, shape index: {}]
  %s3 = inlined_call_operand.<no memory space> [shape: f32[1], index: 3, kind: input, shape index: {}]
  %s4 = inlined_call_operand.hbm [shape: f32[2,1,16,128], index: 4, kind: output, shape index: {}]
  %s5 = sld [smem:[#allocation0]]
  $region61: #{tpu_custom_call.1} parent=0
    _
  %s7 = ssub.s32 1, %s5
  %s8 = scalar_select 0, %s7, %s5
  %9 = sst [smem:[#allocation2]] %s3
  $region1: #{tpu_custom_call.1} parent=0
    #allocation3 [shape = 'u8[12288]{0}', space=vmem, size = 0x3000, scoped, tag = 'input window, operand 0']
    #allocation4 [shape = 's32[2]{0}', space=sflag, size = 0x8, scoped, tag = 'scoped memory for tpu_custom_call.1']
    #allocation5 [shape = 's32[2]{0}', space=sflag, size = 0x8, scoped, tag = 'scoped memory for tpu_custom_call.1']
    #allocation6 [shape = 'u8[16384]{0}', space=vmem, size = 0x4000, scoped, tag = 'output window, operand 0']
    %10 = vsyncpa [#allocation4], 0
    %s11 = scalar_lea.sflag [#allocation4], 1
    %12 = vsyncpa %s11, 0
    %13 = vsyncpa [#allocation5], 0
    %s14 = scalar_lea.sflag [#allocation5], 1
    %15 = vsyncpa %s14, 0
    loop: start=0, step=1, limit=4
    $region2: #{tpu_custom_call.1} parent=1 // loop_pre_header
      _
    $region3: #{tpu_custom_call.1} parent=1 // loop_header
      %s17 = sphi 0, %s21
      %p18 = scmp.ge.s32.totalorder %s17, 4
      %s24 = sphi 0, %s36
      %s25 = sphi 0, %s32
      %s26 = sphi 0, %s24
      %s27 = sphi 0, %s25
      %s28 = sphi 0, %s26
      %s29 = sphi 0, %s27
      %s41 = sphi 0, %s43
      %s44 = sphi 0, %s41
      %s45 = sphi 0, %s44
      %s61 = sphi 0, %s45
      %s65 = sphi 0, %s65
      %s67 = sphi 0, %s65
      %s68 = sphi 0, %s67
      %s82 = sphi 0, %s68
      %s86 = sphi 0, %s86
      %s88 = sphi 0, %s86
      %s89 = sphi 0, %s88
      %s103 = sphi 0, %s89
      %s107 = sphi 0, %s107
      %s109 = sphi 0, %s107
      %s110 = sphi 0, %s109
      %s124 = sphi 0, %s110
      %s132 = sphi 0, %s134
      %s135 = sphi 0, %s132
      %s136 = sphi 0, %s135
      %s152 = sphi 0, %s136
    $region4: #{tpu_custom_call.1} parent=1 // loop_header_branch
      %20 = sbr.rel (%p18) target = $region8
    $region5: #{tpu_custom_call.1} parent=1 // loop_body
      %s22 = ssub.s32 %s17, 1
      %s23 = ssub.s32 %s17, 2
      %s30 = sadd.s32 1, %s25
      %p31 = scmp.ge.s32.totalorder %s30, 1
      %s32 = scalar_select %p31, 0, %s30
      %s33 = sadd.s32 1, %s24
      %s34 = scalar_select %p31, %s33, %s24
      %p35 = scmp.ge.s32.totalorder %s34, 2
      %s36 = scalar_select %p35, 0, %s34
      %s37 = ssub.s32 %s24, %s36
      %s38 = ssub.s32 %s25, %s32
      %s39 = sor.u32 %s37, %s38
      %p40 = scmp.eq.s32.totalorder %s39, 0
      %s42 = sadd.s32 %s41, 1
      %s43 = scalar_select %p40, %s41, %s42
      %p46 = pneg %p40
      %p47 = scmp.eq.s32.totalorder %s17, 1
      %p48 = por %p46, %p47
      %p49 = scmp.ne.s32.totalorder %s41, %s44
      %p50 = scmp.eq.s32.totalorder %s17, 0
      %p51 = por %p49, %p50
      %p52 = scmp.ne.s32.totalorder %s41, %s44
      %p53 = scmp.eq.s32.totalorder %s22, 1
      %p54 = por %p52, %p53
      %p55 = scmp.ne.s32.totalorder %s44, %s45
      %p56 = scmp.eq.s32.totalorder %s22, 0
      %p57 = por %p55, %p56
      %p58 = scmp.ne.s32.totalorder %s44, %s45
      %p59 = scmp.eq.s32.totalorder %s23, 1
      %p60 = por %p58, %p59
      %p62 = scmp.ne.s32.totalorder %s45, %s61
      %p63 = scmp.eq.s32.totalorder %s23, 0
      %p64 = por %p62, %p63
      %s66 = sadd.s32 %s65, 1
      %p69 = scmp.eq.s32.totalorder %s17, 1
      %p70 = scmp.ne.s32.totalorder %s65, %s67
      %p71 = scmp.eq.s32.totalorder %s17, 0
      %p72 = por %p70, %p71
      %p73 = scmp.ne.s32.totalorder %s65, %s67
      %p74 = scmp.eq.s32.totalorder %s22, 1
      %p75 = por %p73, %p74
      %p76 = scmp.ne.s32.totalorder %s67, %s68
      %p77 = scmp.eq.s32.totalorder %s22, 0
      %p78 = por %p76, %p77
      %p79 = scmp.ne.s32.totalorder %s67, %s68
      %p80 = scmp.eq.s32.totalorder %s23, 1
      %p81 = por %p79, %p80
      %p83 = scmp.ne.s32.totalorder %s68, %s82
      %p84 = scmp.eq.s32.totalorder %s23, 0
      %p85 = por %p83, %p84
      %s87 = sadd.s32 %s86, 1
      %p90 = scmp.eq.s32.totalorder %s17, 1
      %p91 = scmp.ne.s32.totalorder %s86, %s88
      %p92 = scmp.eq.s32.totalorder %s17, 0
      %p93 = por %p91, %p92
      %p94 = scmp.ne.s32.totalorder %s86, %s88
      %p95 = scmp.eq.s32.totalorder %s22, 1
      %p96 = por %p94, %p95
      %p97 = scmp.ne.s32.totalorder %s88, %s89
      %p98 = scmp.eq.s32.totalorder %s22, 0
      %p99 = por %p97, %p98
      %p100 = scmp.ne.s32.totalorder %s88, %s89
      %p101 = scmp.eq.s32.totalorder %s23, 1
      %p102 = por %p100, %p101
      %p104 = scmp.ne.s32.totalorder %s89, %s103
      %p105 = scmp.eq.s32.totalorder %s23, 0
      %p106 = por %p104, %p105
      %s108 = sadd.s32 %s107, 1
      %p111 = scmp.eq.s32.totalorder %s17, 1
      %p112 = scmp.ne.s32.totalorder %s107, %s109
      %p113 = scmp.eq.s32.totalorder %s17, 0
      %p114 = por %p112, %p113
      %p115 = scmp.ne.s32.totalorder %s107, %s109
      %p116 = scmp.eq.s32.totalorder %s22, 1
      %p117 = por %p115, %p116
      %p118 = scmp.ne.s32.totalorder %s109, %s110
      %p119 = scmp.eq.s32.totalorder %s22, 0
      %p120 = por %p118, %p119
      %p121 = scmp.ne.s32.totalorder %s109, %s110
      %p122 = scmp.eq.s32.totalorder %s23, 1
      %p123 = por %p121, %p122
      %p125 = scmp.ne.s32.totalorder %s110, %s124
      %p126 = scmp.eq.s32.totalorder %s23, 0
      %p127 = por %p125, %p126
      %s128 = ssub.s32 %s24, %s36
      %s129 = ssub.s32 %s25, %s32
      %s130 = sor.u32 %s128, %s129
      %p131 = scmp.eq.s32.totalorder %s130, 0
      %s133 = sadd.s32 %s132, 1
      %s134 = scalar_select %p131, %s132, %s133
      %p137 = pneg %p131
      %p138 = scmp.eq.s32.totalorder %s17, 1
      %p139 = por %p137, %p138
      %p140 = scmp.ne.s32.totalorder %s132, %s135
      %p141 = scmp.eq.s32.totalorder %s17, 0
      %p142 = por %p140, %p141
      %p143 = scmp.ne.s32.totalorder %s132, %s135
      %p144 = scmp.eq.s32.totalorder %s22, 1
      %p145 = por %p143, %p144
      %p146 = scmp.ne.s32.totalorder %s135, %s136
      %p147 = scmp.eq.s32.totalorder %s22, 0
      %p148 = por %p146, %p147
      %p149 = scmp.ne.s32.totalorder %s135, %s136
      %p150 = scmp.eq.s32.totalorder %s23, 1
      %p151 = por %p149, %p150
      %p153 = scmp.ne.s32.totalorder %s136, %s152
      %p154 = scmp.eq.s32.totalorder %s23, 0
      %p155 = por %p153, %p154
      %p156 = scmp.le.s32.totalorder 1, %s17
      %p157 = scmp.lt.s32.totalorder %s17, 3
      %p158 = pnand %p156, %p157
      %p159 = pneg %p158
      // Predicated region
      $region9: #{tpu_custom_call.1} parent=5 // pred_check
        _
      $region10: #{tpu_custom_call.1} parent=5 // pred_check_branch
        %161 = sbr.rel (%p158) target = $region12
      $region11: #{tpu_custom_call.1} parent=5 // pred_region
        %s162 = ssub.s32 %s17, 1
        // Predicated region
        $region13: #{tpu_custom_call.1} parent=11 // pred_check
          %p163 = pneg %p78
        $region14: #{tpu_custom_call.1} parent=11 // pred_check_branch
          %165 = sbr.rel (%p163) target = $region16
        $region15: #{tpu_custom_call.1} parent=11 // pred_region
          _
        $region16: #{tpu_custom_call.1} parent=11 // pred_fallthru
          _
        // Predicated region
        $region17: #{tpu_custom_call.1} parent=11 // pred_check
          %p166 = pneg %p99
        $region18: #{tpu_custom_call.1} parent=11 // pred_check_branch
          %168 = sbr.rel (%p166) target = $region20
        $region19: #{tpu_custom_call.1} parent=11 // pred_region
          _
        $region20: #{tpu_custom_call.1} parent=11 // pred_fallthru
          _
        // Predicated region
        $region21: #{tpu_custom_call.1} parent=11 // pred_check
          %p169 = pneg %p120
        $region22: #{tpu_custom_call.1} parent=11 // pred_check_branch
          %171 = sbr.rel (%p169) target = $region24
        $region23: #{tpu_custom_call.1} parent=11 // pred_region
          _
        $region24: #{tpu_custom_call.1} parent=11 // pred_fallthru
          _
      $region12: #{tpu_custom_call.1} parent=5 // pred_fallthru
        _
      %p172 = scmp.lt.s32.totalorder %s17, 2
      // Predicated region
      $region25: #{tpu_custom_call.1} parent=5 // pred_check
        %p173 = pneg %p172
      $region26: #{tpu_custom_call.1} parent=5 // pred_check_branch
        %175 = sbr.rel (%p173) target = $region28
      $region27: #{tpu_custom_call.1} parent=5 // pred_region
        // Predicated region
        $region29: #{tpu_custom_call.1} parent=27 // pred_check
          %p176 = pneg %p51
        $region30: #{tpu_custom_call.1} parent=27 // pred_check_branch
          %178 = sbr.rel (%p176) target = $region32
        $region31: #{tpu_custom_call.1} parent=27 // pred_region
          %s179 = sand.u32 %s41, 1
          %s180 = scalar_lea.sflag [#allocation4], %s179
          %s181 = sand.u32 %s41, 1
          %s182 = smul.addr %s181, 12
          %s183 = scalar_lea.vmem [#allocation3], %s182
          %s185 = ssub.s32 192, 192
          %186 = vsyncadd %s180, %s185
          %s187 = smul.addr %s24, 3
          %s188 = sadd.s32 %s25, %s187
          %s189 = smul.addr %s188, 64
          %s190 = scalar_lea.hbm %s0, %s189
          %s191 = sshll.u32 %s183, 4
          %s192 = int_to_ptr.vmem [resolvable:$true] %s191
          %197 = dma.hbm_to_vmem [thread:$0]  %s190, 192, %s192, %s180, 64, 64, 4
        $region32: #{tpu_custom_call.1} parent=27 // pred_fallthru
          _
      $region28: #{tpu_custom_call.1} parent=5 // pred_fallthru
        _
      %p198 = scmp.le.s32.totalorder 1, %s17
      %p199 = scmp.lt.s32.totalorder %s17, 3
      %p200 = pnand %p198, %p199
      %p201 = pneg %p200
      // Predicated region
      $region33: #{tpu_custom_call.1} parent=5 // pred_check
        _
      $region34: #{tpu_custom_call.1} parent=5 // pred_check_branch
        %203 = sbr.rel (%p200) target = $region36
      $region35: #{tpu_custom_call.1} parent=5 // pred_region
        %s204 = ssub.s32 %s17, 1
        %s205 = sand.u32 %s44, 1
        %s206 = scalar_lea.sflag [#allocation4], %s205
        %s207 = sand.u32 %s44, 1
        %s208 = smul.addr %s207, 12
        %s209 = scalar_lea.vmem [#allocation3], %s208
        // Predicated region
        $region37: #{tpu_custom_call.1} parent=35 // pred_check
          %p210 = pneg %p57
        $region38: #{tpu_custom_call.1} parent=35 // pred_check_branch
          %212 = sbr.rel (%p210) target = $region40
        $region39: #{tpu_custom_call.1} parent=35 // pred_region
          %213 = dma.done %s206, 192
        $region40: #{tpu_custom_call.1} parent=35 // pred_fallthru
          _
        %s214 = sand.u32 %s44, 1
        %s215 = scalar_lea.sflag [#allocation4], %s214
        %s216 = sand.u32 %s44, 1
        %s217 = smul.addr %s216, 12
        %s218 = scalar_lea.vmem [#allocation3], %s217
        %p219 = pneg %p57
        %p220 = pneg %p54
        %p221 = pneg %p78
        %p222 = pneg %p75
        %p223 = pneg %p99
        %p224 = pneg %p96
        %p225 = pneg %p120
        %p226 = pneg %p117
        %p227 = pneg %p148
        %p228 = pneg %p145
        %s229 = sand.u32 %s135, 1
        %s230 = scalar_lea.sflag [#allocation5], %s229
        %s231 = sand.u32 %s135, 1
        %s232 = smul.addr %s231, 16
        %s233 = scalar_lea.vmem [#allocation6], %s232
        %v235 = vld [vmem:[%s1] sm:$0xf]
        %v236 = vld [vmem:[%s1 + $0x4] sm:$0xf]
        %v237 = vld [vmem:[%s209] sm:$0xf]
        %v238 = vld [vmem:[%s209 + $0x4] sm:$0xf]
        %v239 = vld [vmem:[%s209 + $0x8] sm:$0xf]
        %v240 = vld [vmem:[%s2] sm:$0xff]
        %v241 = vld [vmem:[%s2 + $0x8] sm:$0xff]
        %243 = vset.pattern.permute.xlu0 0
        %244 = vperm.xlu0 %243, %v240
        %v245 = vpop.permute.xlu0 %244
        %248 = vset.pattern.permute.xlu0 0
        %249 = vperm.xlu0 %248, %v241
        %v250 = vpop.permute.xlu0 %249
        %v254 = vunpack.c.l.b16 %v235
        %v255 = vunpack.c.l.b16 %v236
        %v256 = vpack.c.b16 %v255, %v254
        %v260 = vunpack.c.l.b16 %v237
        %v261 = vunpack.c.l.b16 %v238
        %v262 = vunpack.c.l.b16 %v239
        %v263 = vpack.c.b16 %v261, %v260
        %v264 = vpack.c.b16 %v262, %v262
        %vm266 = vcmask 195584
        %v268 = vsel %vm266, %v256, 0
        %vm270 = vcmask 1043456
        %v272 = vsel %vm270, %v264, 0
        %274 = vmatprep.subr.bf16.mxu0 0
        %275 = vmatpush1.bf16.msra.mxu0 %v263
        %276 = vmatprep.subr.bf16.mxu0 0
        %277 = vmatpush1.bf16.msra.mxu0 %v272
        %278 = vmatprep.subr.bf16.mxu0 0
        %279 = vmatpush1.bf16.msra.mxu0 0
        %280 = vmatprep.subr.bf16.mxu0 0
        %281 = vmatpush1.bf16.msra.mxu0 0
        %282 = vmatprep.subr.bf16.mxu0 0
        %283 = vmatpush1.bf16.msra.mxu0 0
        %284 = vmatprep.subr.bf16.mxu0 0
        %285 = vmatpush1.bf16.msra.mxu0 0
        %286 = vmatprep.subr.bf16.mxu0 0
        %287 = vmatpush1.bf16.msra.mxu0 0
        %288 = vmatprep.subr.bf16.mxu0 0
        %289 = vmatpush1.bf16.msra.mxu0 0
        %290 = vmatprep.subr.bf16.mxu0 0
        %291 = vmatpush1.bf16.msra.mxu0 0
        %292 = vmatprep.subr.bf16.mxu0 0
        %293 = vmatpush1.bf16.msra.mxu0 0
        %294 = vmatprep.subr.bf16.mxu0 0
        %295 = vmatpush1.bf16.msra.mxu0 0
        %296 = vmatprep.subr.bf16.mxu0 0
        %297 = vmatpush1.bf16.msra.mxu0 0
        %298 = vmatprep.subr.bf16.mxu0 0
        %299 = vmatpush1.bf16.msra.mxu0 0
        %300 = vmatprep.subr.bf16.mxu0 0
        %301 = vmatpush1.bf16.msra.mxu0 0
        %302 = vmatprep.subr.bf16.mxu0 0
        %303 = vmatpush1.bf16.msra.mxu0 0
        %304 = vmatprep.subr.bf16.mxu0 0
        %305 = vmatpush1.bf16.msra.mxu0 0
        %306 = vmatprep.mubr.bf16.mxu0 0
        %307 = vmatmul.mubr.bf16.gmra.mrb[0].mxu0 %v268
        %v308 = vpop.f32.mrb[0].mxu0
        %v309 = vadd.f32 %v245, %v308
        %v310 = vpop.f32.mrb[0].mxu0
        %v311 = vpop.f32.mrb[0].mxu0
        %v312 = vadd.f32 %v250, %v311
        %v313 = vpop.f32.mrb[0].mxu0
        %314 = vdwg.mxu0
        %s315 = sld [smem:[#allocation2]]
        %vm316 = vcmp.gt.f32.partialorder %v309, 0.0
        %vm317 = vcmp.gt.f32.partialorder %v312, 0.0
        %v318 = vstv %s315
        %v319 = vmul.f32 %v318, %v309
        %v320 = vmul.f32 %v318, %v312
        %v321 = vsel %vm316, %v309, %v319
        %v322 = vsel %vm317, %v312, %v320
        %p323 = scmp.ne.s32.totalorder %s27, 0
        // Predicated region
        $region41: #{tpu_custom_call.1} parent=35 // pred_check
          %p324 = pneg %p323
        $region42: #{tpu_custom_call.1} parent=35 // pred_check_branch
          %326 = sbr.rel (%p324) target = $region44
        $region43: #{tpu_custom_call.1} parent=35 // pred_region
          %v327 = vadd.f32 %v321, %v322
          %328 = vst [vmem:[%s233] sm:$0xff] %v327
          %v329 = vmul.f32 %v321, %v321
          %v330 = vmul.f32 %v322, %v322
          %v331 = vadd.f32 %v329, %v330
          %332 = vst [vmem:[%s233 + $0x8] sm:$0xff] %v331
        $region44: #{tpu_custom_call.1} parent=35 // pred_fallthru
          _
        %p333 = scmp.eq.s32.totalorder %s27, 0
        // Predicated region
        $region45: #{tpu_custom_call.1} parent=35 // pred_check
          %p334 = pneg %p333
        $region46: #{tpu_custom_call.1} parent=35 // pred_check_branch
          %336 = sbr.rel (%p334) target = $region48
        $region47: #{tpu_custom_call.1} parent=35 // pred_region
          %v337 = vlaneseq
          %v338 = vand.u32 %v337, 127
          %vm339 = vcmp.lt.s32.totalorder %v338, 16
          %v340 = vsel %vm339, %v321, 0.0
          %v341 = vsel %vm339, %v322, 0.0
          %v342 = vadd.f32 %v340, %v341
          %343 = vst [vmem:[%s233] sm:$0xff] %v342
          %v344 = vmul.f32 %v340, %v340
          %v345 = vmul.f32 %v341, %v341
          %v346 = vadd.f32 %v344, %v345
          %347 = vst [vmem:[%s233 + $0x8] sm:$0xff] %v346
        $region48: #{tpu_custom_call.1} parent=35 // pred_fallthru
          _
        %s348 = sand.u32 %s135, 1
        %s349 = scalar_lea.sflag [#allocation5], %s348
        %s350 = sand.u32 %s135, 1
        %s351 = smul.addr %s350, 16
        %s352 = scalar_lea.vmem [#allocation6], %s351
        // Predicated region
        $region49: #{tpu_custom_call.1} parent=35 // pred_check
          %p353 = pneg %p145
        $region50: #{tpu_custom_call.1} parent=35 // pred_check_branch
          %355 = sbr.rel (%p353) target = $region52
        $region51: #{tpu_custom_call.1} parent=35 // pred_region
          %s357 = ssub.s32 256, 256
          %358 = vsyncadd %s349, %s357
          %s359 = smul.addr %s27, 2
          %s360 = smul.addr %s26, 2
          %s361 = sadd.s32 %s359, %s360
          %s362 = smul.addr %s361, 128
          %s363 = scalar_lea.hbm %s4, %s362
          %s364 = sshll.u32 %s352, 4
          %s365 = int_to_ptr.vmem [resolvable:$true] %s364
          %370 = dma.vmem_to_hbm [thread:$0]  %s365, 256, %s363, %s349, 128, 128, 8
        $region52: #{tpu_custom_call.1} parent=35 // pred_fallthru
          _
      $region36: #{tpu_custom_call.1} parent=5 // pred_fallthru
        _
      %p371 = scmp.le.s32.totalorder 2, %s17
      // Predicated region
      $region53: #{tpu_custom_call.1} parent=5 // pred_check
        %p372 = pneg %p371
      $region54: #{tpu_custom_call.1} parent=5 // pred_check_branch
        %374 = sbr.rel (%p372) target = $region56
      $region55: #{tpu_custom_call.1} parent=5 // pred_region
        %s375 = ssub.s32 %s17, 2
        // Predicated region
        $region57: #{tpu_custom_call.1} parent=55 // pred_check
          %p376 = pneg %p151
        $region58: #{tpu_custom_call.1} parent=55 // pred_check_branch
          %378 = sbr.rel (%p376) target = $region60
        $region59: #{tpu_custom_call.1} parent=55 // pred_region
          %s379 = sand.u32 %s136, 1
          %s380 = scalar_lea.sflag [#allocation5], %s379
          %s381 = sand.u32 %s136, 1
          %s382 = smul.addr %s381, 16
          %s383 = scalar_lea.vmem [#allocation6], %s382
          %384 = dma.done %s380, 256
        $region60: #{tpu_custom_call.1} parent=55 // pred_fallthru
          _
      $region56: #{tpu_custom_call.1} parent=5 // pred_fallthru
        _
    $region6: #{tpu_custom_call.1} parent=1 // loop_footer
      %s21 = sadd.s32 1, %s17
    $region7: #{tpu_custom_call.1} parent=1 // loop_footer_branch
      %16 = sbr.rel target = $region3
    $region8: #{tpu_custom_call.1} parent=1 // loop_exit
      _
    %385 = vsyncpa [#allocation4], 1
    %s386 = scalar_lea.sflag [#allocation4], 1
    %387 = vsyncpa %s386, 1
    %388 = vsyncpa [#allocation5], 1
    %s389 = scalar_lea.sflag [#allocation5], 1
    %390 = vsyncpa %s389, 1

</llo_original>
